<compile_context>
chip_gen: v5e
topology: v5e:2x2
jax: 0.10.0
libtpu: 0.0.40
codegen_flags: <defaults>
</compile_context>

<pallas_src>
import jax
import jax.numpy as jnp
from jax.experimental import pallas as pl
from jax.experimental.pallas import tpu as pltpu

# Packed-slab row layout (all unused entries are zero):
#   rows 0..2, lanes 0..4 : w1.T            (w1 is (5, 3))
#   row  3,    lanes 0..4 : b1
#   row  3,    lane  5    : 1.0             (ones-lane used to fold b2)
#   rows 4..5, lanes 0..4 : w2              (w2 is (2, 5))
#   rows 4..5, lane  5    : b2
_ROWS, _LANES = 8, 128


def sinkcat_kernel(x_ref, params_ref, o_ref):
    # x_ref:      SMEM (3,)        -- input features as scalars
    # params_ref: VMEM (8, 128)    -- packed parameter slab (one vreg)
    # o_ref:      VMEM (2, 1)      -- tanh(linear2(square(linear1(x))))
    x0 = x_ref[0]
    x1 = x_ref[1]
    x2 = x_ref[2]

    # Linear 1 as unrolled scalar-broadcast FMAs (VPU only, no cross-lane ops).
    # Lane 5 of the bias row is 1.0, so h[0, 5] == 1 (it survives the square
    # and later folds b2 into the lane reduction of linear 2).
    h = (x0 * params_ref[0:1, :]
         + x1 * params_ref[1:2, :]
         + x2 * params_ref[2:3, :]
         + params_ref[3:4, :])                       # (1, 128)

    # Pointwise square.
    h = h * h                                        # (1, 128); lane 5 stays 1

    # Linear 2: rows 4..5 hold [w2 | b2 @ lane 5 | 0...]; one broadcast
    # multiply + a single lane reduction gives y[j] = h . w2[j] + b2[j].
    pw = params_ref[4:6, :] * h                      # (2, 128)
    y = jnp.sum(pw, axis=-1, keepdims=True)          # (2, 1)

    # tanh (EUP); .view(-1) is a free reshape done in the (jitted) wrapper.
    o_ref[...] = jnp.tanh(y)


def pack_params(w1, b1, w2, b2):
    """Pack all parameters into one (8, 128) f32 VMEM-aligned slab (done once)."""
    slab = jnp.zeros((_ROWS, _LANES), jnp.float32)
    slab = slab.at[0:3, 0:5].set(w1.T.astype(jnp.float32))   # w1.T  (3, 5)
    slab = slab.at[3, 0:5].set(b1.astype(jnp.float32))       # b1    (5,)
    slab = slab.at[3, 5].set(1.0)                            # ones-lane
    slab = slab.at[4:6, 0:5].set(w2.astype(jnp.float32))     # w2    (2, 5)
    slab = slab.at[4:6, 5].set(b2.astype(jnp.float32))       # b2    (2,)
    return slab


@jax.jit
def sink_cat(x, params):
    # x: (1, 3) float32, params: packed (8, 128) slab -> (2,) float32
    out = pl.pallas_call(
        sinkcat_kernel,
        out_shape=jax.ShapeDtypeStruct((2, 1), jnp.float32),
        in_specs=[
            pl.BlockSpec(memory_space=pltpu.MemorySpace.SMEM),
            pl.BlockSpec(memory_space=pltpu.MemorySpace.VMEM),
        ],
        out_specs=pl.BlockSpec(memory_space=pltpu.MemorySpace.VMEM),
    )(x.reshape(-1).astype(jnp.float32), params)
    return out.reshape(-1)   # .view(-1) -> (2,)


def init_params(key):
    # nn.Linear parameter shapes: linear1 (5, 3)/(5,), linear2 (2, 5)/(2,)
    k1, k2, k3, k4 = jax.random.split(key, 4)
    w1 = jax.random.uniform(k1, (5, 3), jnp.float32, -0.5, 0.5)
    b1 = jax.random.uniform(k2, (5,), jnp.float32, -0.5, 0.5)
    w2 = jax.random.uniform(k3, (2, 5), jnp.float32, -0.5, 0.5)
    b2 = jax.random.uniform(k4, (2,), jnp.float32, -0.5, 0.5)
    return w1, b1, w2, b2


def reference(x, w1, b1, w2, b2):
    h = x @ w1.T + b1
    h = h * h
    y = (h @ w2.T + b2).reshape(-1)
    return jnp.tanh(y)


if __name__ == "__main__":
    # Input (1, 3) so the flattened output has shape (2,), matching the
    # module's `assert x.shape == torch.Size([2])`.
    key = jax.random.PRNGKey(0)
    kx, kp = jax.random.split(key)
    x = jax.random.normal(kx, (1, 3), dtype=jnp.float32)
    w1, b1, w2, b2 = init_params(kp)

    params = pack_params(w1, b1, w2, b2)       # done once, off the hot path

    out = sink_cat(x, params)
    out = jax.block_until_ready(out)

    ref = reference(x, w1, b1, w2, b2)
    assert out.shape == (2,), out.shape
    assert jnp.allclose(out, ref, atol=1e-5, rtol=1e-5), (out, ref)

    print("KERNEL_OK")
</pallas_src>

<mosaic_0001>
module attributes {stable_mosaic.version = 11 : i64} {
  func.func @sinkcat_kernel(%arg0: memref<3xf32, #tpu.memory_space<smem>>, %arg1: memref<8x128xf32, #tpu.memory_space<vmem>>, %arg2: memref<2x1xf32, #tpu.memory_space<vmem>>) attributes {dimension_semantics = [], scalar_prefetch = 0 : i64, scratch_operands = 0 : i64, tpu.core_type = #tpu.core_type<tc>} {
    %c0 = arith.constant 0 : index
    %0 = memref.load %arg0[%c0] : memref<3xf32, #tpu.memory_space<smem>>
    %c1 = arith.constant 1 : index
    %1 = memref.load %arg0[%c1] : memref<3xf32, #tpu.memory_space<smem>>
    %c2 = arith.constant 2 : index
    %2 = memref.load %arg0[%c2] : memref<3xf32, #tpu.memory_space<smem>>
    %c0_0 = arith.constant 0 : index
    %c0_1 = arith.constant 0 : index
    %3 = vector.load %arg1[%c0_0, %c0_1] : memref<8x128xf32, #tpu.memory_space<vmem>>, vector<1x128xf32>
    %4 = vector.broadcast %0 : f32 to vector<1x128xf32>
    %5 = arith.mulf %4, %3 : vector<1x128xf32>
    %c1_2 = arith.constant 1 : index
    %c0_3 = arith.constant 0 : index
    %6 = vector.load %arg1[%c1_2, %c0_3] : memref<8x128xf32, #tpu.memory_space<vmem>>, vector<1x128xf32>
    %7 = vector.broadcast %1 : f32 to vector<1x128xf32>
    %8 = arith.mulf %7, %6 : vector<1x128xf32>
    %9 = arith.addf %5, %8 : vector<1x128xf32>
    %c2_4 = arith.constant 2 : index
    %c0_5 = arith.constant 0 : index
    %10 = vector.load %arg1[%c2_4, %c0_5] : memref<8x128xf32, #tpu.memory_space<vmem>>, vector<1x128xf32>
    %11 = vector.broadcast %2 : f32 to vector<1x128xf32>
    %12 = arith.mulf %11, %10 : vector<1x128xf32>
    %13 = arith.addf %9, %12 : vector<1x128xf32>
    %c3 = arith.constant 3 : index
    %c0_6 = arith.constant 0 : index
    %14 = vector.load %arg1[%c3, %c0_6] : memref<8x128xf32, #tpu.memory_space<vmem>>, vector<1x128xf32>
    %15 = arith.addf %13, %14 : vector<1x128xf32>
    %16 = arith.mulf %15, %15 : vector<1x128xf32>
    %c4 = arith.constant 4 : index
    %c0_7 = arith.constant 0 : index
    %17 = vector.load %arg1[%c4, %c0_7] : memref<8x128xf32, #tpu.memory_space<vmem>>, vector<2x128xf32>
    %18 = vector.broadcast %16 : vector<1x128xf32> to vector<2x128xf32>
    %19 = arith.mulf %17, %18 : vector<2x128xf32>
    %cst = arith.constant dense<0.000000e+00> : vector<2xf32>
    %20 = vector.multi_reduction <add>, %19, %cst [1] : vector<2x128xf32> to vector<2xf32>
    %21 = vector.shape_cast %20 : vector<2xf32> to vector<2x1xf32>
    %22 = math.tanh %21 : vector<2x1xf32>
    %c0_8 = arith.constant 0 : index
    %c0_9 = arith.constant 0 : index
    %23 = vector.load %arg2[%c0_8, %c0_9] : memref<2x1xf32, #tpu.memory_space<vmem>>, vector<2x1xf32>
    tpu.vector_store %arg2[%c0_8, %c0_9], %22 {strides = array<i32>} : memref<2x1xf32, #tpu.memory_space<vmem>>, vector<2x1xf32>,
    return
  }
}

</mosaic_0001>

<llo_original>
// kernel: sink_cat.1
$region0: #{sink_cat.1}
  #allocation0 [shape = 'u32[]', space=smem, size = 0x4, offset = 0x4, fixed_abs, tag = 'smem constant byte address 0x4 - core index']
  #allocation1 [shape = 'u32[72,128]{1,0:T(1,128)}', space=vmem, size = 0x9000, scoped, tag = 'internal scratch']
  %s0 = inlined_call_operand.hbm [shape: f32[3], index: 0, kind: input, shape index: {}]
  %s1 = inlined_call_operand.hbm [shape: f32[8,128], index: 1, kind: input, shape index: {}]
  %s2 = inlined_call_operand.vmem [shape: f32[2,1], index: 2, kind: output, shape index: {}]
  %s3 = sld [smem:[#allocation0]]
  $region26: #{sink_cat.1} parent=0
    _
  %s5 = ssub.s32 1, %s3
  %s6 = scalar_select 0, %s5, %s3
  $region1: #{sink_cat.1} parent=0
    #allocation2 [shape = 'u8[512]{0}', space=smem, size = 0x200, scoped, tag = 'input window, operand 0, single buffered']
    #allocation3 [shape = 's32[1]{0}', space=sflag, size = 0x4, scoped, tag = 'scoped memory for sink_cat.1']
    #allocation4 [shape = 's32[1]{0}', space=sflag, size = 0x4, scoped, tag = 'scoped memory for sink_cat.1']
    #allocation5 [shape = 'u8[4096]{0}', space=vmem, size = 0x1000, scoped, tag = 'input window, operand 1, single buffered']
    %7 = vsyncpa [#allocation4], 0
    %8 = vsyncpa [#allocation3], 0
    // Predicated region
    $region2: #{sink_cat.1} parent=1 // pred_check
      _
    $region3: #{sink_cat.1} parent=1 // pred_check_branch
      %10 = sbr.rel (0) target = $region5
    $region4: #{sink_cat.1} parent=1 // pred_region
      %12 = vsyncadd [#allocation4], 0
      %s14 = sshll.u32 %s0, 4
      %s15 = int_to_ptr.hbm [resolvable:$true] %s14
      %17 = dma.hbm_to_smem %s15, 16, [#allocation2], [#allocation4]
    $region5: #{sink_cat.1} parent=1 // pred_fallthru
      _
    // Predicated region
    $region6: #{sink_cat.1} parent=1 // pred_check
      _
    $region7: #{sink_cat.1} parent=1 // pred_check_branch
      %19 = sbr.rel (0) target = $region9
    $region8: #{sink_cat.1} parent=1 // pred_region
      %21 = vsyncadd [#allocation3], 0
      %s23 = sshll.u32 %s1, 4
      %s24 = int_to_ptr.hbm [resolvable:$true] %s23
      %s25 = sshll.u32 [#allocation5], 4
      %s26 = int_to_ptr.vmem [resolvable:$true] %s25
      %28 = dma.hbm_to_vmem [thread:$0]  %s24, 128, %s26, [#allocation3]
    $region9: #{sink_cat.1} parent=1 // pred_fallthru
      _
    // Predicated region
    $region10: #{sink_cat.1} parent=1 // pred_check
      _
    $region11: #{sink_cat.1} parent=1 // pred_check_branch
      %30 = sbr.rel (0) target = $region13
    $region12: #{sink_cat.1} parent=1 // pred_region
      %32 = dma.done [#allocation4], 16
    $region13: #{sink_cat.1} parent=1 // pred_fallthru
      _
    // Predicated region
    $region14: #{sink_cat.1} parent=1 // pred_check
      _
    $region15: #{sink_cat.1} parent=1 // pred_check_branch
      %34 = sbr.rel (0) target = $region17
    $region16: #{sink_cat.1} parent=1 // pred_region
      %36 = dma.done [#allocation3], 128
    $region17: #{sink_cat.1} parent=1 // pred_fallthru
      _
    %37 = sfence
    %s38 = sld [smem:[#allocation2]]
    %s39 = sld [smem:[#allocation2 + $0x1]]
    %s40 = sld [smem:[#allocation2 + $0x2]]
    %v41 = vld [vmem:[#allocation5] sm:$0x1]
    %v42 = vstv %s38
    %v43 = vmul.f32 %v42, %v41
    %v44 = vld [vmem:[#allocation5 + $0x1] sm:$0x1]
    %v45 = vstv %s39
    %v46 = vmul.f32 %v45, %v44
    %v47 = vadd.f32 %v43, %v46
    %v48 = vld [vmem:[#allocation5 + $0x2] sm:$0x1]
    %v49 = vstv %s40
    %v50 = vmul.f32 %v49, %v48
    %v51 = vadd.f32 %v47, %v50
    %v52 = vld [vmem:[#allocation5 + $0x3] sm:$0x1]
    %v53 = vadd.f32 %v51, %v52
    %v54 = vmul.f32 %v53, %v53
    %v55 = vld [vmem:[#allocation5 + $0x4] sm:$0x3]
    %v56 = vperm.slane %v54, 0
    %v57 = vmul.f32 %v55, %v56
    %vm58 = vcmask 1041408
    %v59 = vsel %vm58, %v57, 0.0
    %60 = vadd.xlane.f32.xlu0 %v59
    %v61 = vpop.xlane.xlu0 %60
    %v62 = vtanh.pop %v61
    %vm63 = vcmask 1024
    %64 = vst.msk [vmem:[%s2] sm:$0x3] %vm63, %v62
    // Predicated region
    $region18: #{sink_cat.1} parent=1 // pred_check
      _
    $region19: #{sink_cat.1} parent=1 // pred_check_branch
      %66 = sbr.rel (0) target = $region21
    $region20: #{sink_cat.1} parent=1 // pred_region
      _
    $region21: #{sink_cat.1} parent=1 // pred_fallthru
      _
    // Predicated region
    $region22: #{sink_cat.1} parent=1 // pred_check
      _
    $region23: #{sink_cat.1} parent=1 // pred_check_branch
      %68 = sbr.rel (0) target = $region25
    $region24: #{sink_cat.1} parent=1 // pred_region
      _
    $region25: #{sink_cat.1} parent=1 // pred_fallthru
      _
    %69 = vsyncpa [#allocation3], 1
    %70 = vsyncpa [#allocation4], 1

</llo_original>
